<compile_context>
chip_gen: v5e
topology: v5e:2x2
jax: 0.10.0
libtpu: 0.0.40
codegen_flags: <defaults>
</compile_context>

<pallas_src>
import math
import functools

import jax
import jax.numpy as jnp
from jax.experimental import pallas as pl
from jax.experimental.pallas import tpu as pltpu


# ----------------------------- Pallas kernel -----------------------------
def _rmsnorm_kernel(x_ref, w_ref, b_ref, o_ref, *, eps):
    # x_ref: (block_rows, H)   w_ref/b_ref: (1, H)   o_ref: (block_rows, H)
    x = x_ref[...].astype(jnp.float32)
    var = jnp.mean(x * x, axis=-1, keepdims=True)            # (block_rows, 1), f32
    inv = jax.lax.rsqrt(var + eps)                            # EUP rsqrt (free slot)
    y = (x * inv) * w_ref[...].astype(jnp.float32)            # elementwise affine
    y = y + b_ref[...].astype(jnp.float32)
    o_ref[...] = y.astype(o_ref.dtype)


def pallas_rmsnorm(x, weight=None, bias=None, *, eps=1e-6, block_rows=128):
    """RMSNorm over the last axis of `x`.

    weight/bias may be None (treated as ones/zeros, matching
    elementwise_affine=False / bias=False semantics).
    """
    orig_shape = x.shape
    H = orig_shape[-1]
    rows = int(math.prod(orig_shape[:-1])) if len(orig_shape) > 1 else 1

    if weight is None:
        weight = jnp.ones((H,), dtype=x.dtype)
    if bias is None:
        bias = jnp.zeros((H,), dtype=x.dtype)

    x2 = x.reshape(rows, H)
    w2 = weight.reshape(1, H).astype(x.dtype)
    b2 = bias.reshape(1, H).astype(x.dtype)

    # Row tiling: big blocks to amortize per-step overhead; fall back to a single
    # full block when rows is not a multiple of the tile (block == full dim is legal).
    if rows < block_rows or rows % block_rows != 0:
        block_rows = rows
    grid = (rows // block_rows,)

    kernel = functools.partial(_rmsnorm_kernel, eps=float(eps))
    out = pl.pallas_call(
        kernel,
        out_shape=jax.ShapeDtypeStruct((rows, H), x.dtype),
        grid=grid,
        in_specs=[
            pl.BlockSpec((block_rows, H), lambda i: (i, 0)),   # x row tile
            pl.BlockSpec((1, H), lambda i: (0, 0)),            # weight (resident)
            pl.BlockSpec((1, H), lambda i: (0, 0)),            # bias   (resident)
        ],
        out_specs=pl.BlockSpec((block_rows, H), lambda i: (i, 0)),
        compiler_params=pltpu.CompilerParams(
            dimension_semantics=("parallel",),     # shard row tiles across TCs (v7x)
            vmem_limit_bytes=32 * 1024 * 1024,     # explicit budget; working set ≪ this
        ),
    )(x2, w2, b2)
    return out.reshape(orig_shape)


# ----------------------------- pure-JAX reference -----------------------------
def reference_rmsnorm(x, weight, bias, eps=1e-6):
    input_dtype = x.dtype
    var = jnp.mean(jnp.square(x.astype(jnp.float32)), axis=-1, keepdims=True)
    y = x * jax.lax.rsqrt(var + eps)
    y = (y * weight).astype(input_dtype)
    y = (y + bias).astype(input_dtype)
    return y


# ----------------------------- main -----------------------------
if __name__ == "__main__":
    key = jax.random.PRNGKey(0)
    k1, k2, k3 = jax.random.split(key, 3)

    B, S, H = 2, 128, 256          # 256 rows -> two parallel 128-row tiles; H lane-dense
    eps = 1e-6

    x = jax.random.normal(k1, (B, S, H), jnp.float32)
    weight = 1.0 + 0.1 * jax.random.normal(k2, (H,), jnp.float32)
    bias = 0.05 * jax.random.normal(k3, (H,), jnp.float32)

    out = pallas_rmsnorm(x, weight, bias, eps=eps)
    out = jax.block_until_ready(out)

    ref = reference_rmsnorm(x, weight, bias, eps=eps)
    assert out.shape == (B, S, H)
    assert out.dtype == x.dtype
    assert jnp.allclose(out, ref, rtol=1e-5, atol=1e-5), float(jnp.max(jnp.abs(out - ref)))

    # Also exercise the no-affine / no-bias configuration paths of the module.
    out_plain = jax.block_until_ready(pallas_rmsnorm(x, None, None, eps=eps))
    ref_plain = reference_rmsnorm(x, jnp.ones((H,), jnp.float32),
                                  jnp.zeros((H,), jnp.float32), eps=eps)
    assert jnp.allclose(out_plain, ref_plain, rtol=1e-5, atol=1e-5)

    print("KERNEL_OK")
</pallas_src>

<mosaic_0001>
module attributes {stable_mosaic.version = 11 : i64} {
  func.func @_rmsnorm_kernel(%arg0: i32, %arg1: memref<128x256xf32, #tpu.memory_space<vmem>>, %arg2: memref<1x256xf32, #tpu.memory_space<vmem>>, %arg3: memref<1x256xf32, #tpu.memory_space<vmem>>, %arg4: memref<128x256xf32, #tpu.memory_space<vmem>>) attributes {dimension_semantics = [#tpu.dimension_semantics<parallel>], iteration_bounds = array<i64: 2>, scalar_prefetch = 0 : i64, scratch_operands = 0 : i64, tpu.core_type = #tpu.core_type<tc>, window_params = [{transform_indices = @transform_0, window_bounds = array<i64: 128, 256>}, {pipeline_mode = #tpu.pipeline_mode<synchronous>, transform_indices = @transform_1, window_bounds = array<i64: 1, 256>}, {pipeline_mode = #tpu.pipeline_mode<synchronous>, transform_indices = @transform_2, window_bounds = array<i64: 1, 256>}, {transform_indices = @transform_3, window_bounds = array<i64: 128, 256>}]} {
    %c0 = arith.constant 0 : index
    %c0_0 = arith.constant 0 : index
    %0 = vector.load %arg1[%c0, %c0_0] : memref<128x256xf32, #tpu.memory_space<vmem>>, vector<128x256xf32>
    %1 = arith.mulf %0, %0 : vector<128x256xf32>
    %cst = arith.constant dense<0.000000e+00> : vector<128xf32>
    %2 = vector.multi_reduction <add>, %1, %cst [1] : vector<128x256xf32> to vector<128xf32>
    %3 = vector.shape_cast %2 : vector<128xf32> to vector<128x1xf32>
    %cst_1 = arith.constant 2.560000e+02 : f32
    %4 = vector.broadcast %cst_1 : f32 to vector<128x1xf32>
    %5 = arith.divf %3, %4 : vector<128x1xf32>
    %cst_2 = arith.constant 9.99999997E-7 : f32
    %6 = vector.broadcast %cst_2 : f32 to vector<128x1xf32>
    %7 = arith.addf %5, %6 : vector<128x1xf32>
    %8 = math.rsqrt %7 : vector<128x1xf32>
    %9 = vector.broadcast %8 : vector<128x1xf32> to vector<128x256xf32>
    %10 = arith.mulf %0, %9 : vector<128x256xf32>
    %c0_3 = arith.constant 0 : index
    %c0_4 = arith.constant 0 : index
    %11 = vector.load %arg2[%c0_3, %c0_4] : memref<1x256xf32, #tpu.memory_space<vmem>>, vector<1x256xf32>
    %12 = vector.broadcast %11 : vector<1x256xf32> to vector<128x256xf32>
    %13 = arith.mulf %10, %12 : vector<128x256xf32>
    %c0_5 = arith.constant 0 : index
    %c0_6 = arith.constant 0 : index
    %14 = vector.load %arg3[%c0_5, %c0_6] : memref<1x256xf32, #tpu.memory_space<vmem>>, vector<1x256xf32>
    %15 = vector.broadcast %14 : vector<1x256xf32> to vector<128x256xf32>
    %16 = arith.addf %13, %15 : vector<128x256xf32>
    %c0_7 = arith.constant 0 : index
    %c0_8 = arith.constant 0 : index
    %17 = vector.load %arg4[%c0_7, %c0_8] : memref<128x256xf32, #tpu.memory_space<vmem>>, vector<128x256xf32>
    tpu.vector_store %arg4[%c0_7, %c0_8], %16 {strides = array<i32>} : memref<128x256xf32, #tpu.memory_space<vmem>>, vector<128x256xf32>,
    return
  }
  func.func @transform_0(%arg0: i32) -> (i32, i32) {
    %c0_i32 = arith.constant 0 : i32
    %c0_i32_0 = arith.constant 0 : i32
    return %arg0, %c0_i32 : i32, i32
  }
  func.func @transform_1(%arg0: i32) -> (i32, i32) {
    %c0_i32 = arith.constant 0 : i32
    %c0_i32_0 = arith.constant 0 : i32
    %c0_i32_1 = arith.constant 0 : i32
    return %c0_i32, %c0_i32_0 : i32, i32
  }
  func.func @transform_2(%arg0: i32) -> (i32, i32) {
    %c0_i32 = arith.constant 0 : i32
    %c0_i32_0 = arith.constant 0 : i32
    %c0_i32_1 = arith.constant 0 : i32
    return %c0_i32, %c0_i32_0 : i32, i32
  }
  func.func @transform_3(%arg0: i32) -> (i32, i32) {
    %c0_i32 = arith.constant 0 : i32
    %c0_i32_0 = arith.constant 0 : i32
    return %arg0, %c0_i32 : i32, i32
  }
}

</mosaic_0001>

<llo_original>
// kernel: tpu_custom_call.1
$region0: #{tpu_custom_call.1}
  #allocation0 [shape = 'u32[]', space=smem, size = 0x4, offset = 0x4, fixed_abs, tag = 'smem constant byte address 0x4 - core index']
  #allocation1 [shape = 'u32[72,128]{1,0:T(1,128)}', space=vmem, size = 0x9000, scoped, tag = 'internal scratch']
  %s0 = inlined_call_operand.hbm [shape: f32[256,256], index: 0, kind: input, shape index: {}]
  %s1 = inlined_call_operand.hbm [shape: f32[1,256], index: 1, kind: input, shape index: {}]
  %s2 = inlined_call_operand.hbm [shape: f32[1,256], index: 2, kind: input, shape index: {}]
  %s3 = inlined_call_operand.hbm [shape: f32[256,256], index: 3, kind: output, shape index: {}]
  %s4 = sld [smem:[#allocation0]]
  $region57: #{tpu_custom_call.1} parent=0
    _
  %s6 = ssub.s32 1, %s4
  %s7 = scalar_select 0, %s6, %s4
  $region1: #{tpu_custom_call.1} parent=0
    #allocation2 [shape = 'u8[262144]{0}', space=vmem, size = 0x40000, scoped, tag = 'input window, operand 0']
    #allocation3 [shape = 's32[2]{0}', space=sflag, size = 0x8, scoped, tag = 'scoped memory for tpu_custom_call.1']
    #allocation4 [shape = 's32[2]{0}', space=sflag, size = 0x8, scoped, tag = 'scoped memory for tpu_custom_call.1']
    #allocation5 [shape = 'u8[1024]{0}', space=vmem, size = 0x400, scoped, tag = 'input window, operand 1, single buffered']
    #allocation6 [shape = 's32[1]{0}', space=sflag, size = 0x4, scoped, tag = 'scoped memory for tpu_custom_call.1']
    #allocation7 [shape = 'u8[1024]{0}', space=vmem, size = 0x400, scoped, tag = 'input window, operand 2, single buffered']
    #allocation8 [shape = 'u8[262144]{0}', space=vmem, size = 0x40000, scoped, tag = 'output window, operand 0']
    %8 = vsyncpa [#allocation3], 0
    %s9 = scalar_lea.sflag [#allocation3], 1
    %10 = vsyncpa %s9, 0
    %11 = vsyncpa [#allocation6], 0
    %12 = vsyncpa [#allocation4], 0
    %s13 = scalar_lea.sflag [#allocation4], 1
    %14 = vsyncpa %s13, 0
    loop: start=0, step=1, limit=4
    $region2: #{tpu_custom_call.1} parent=1 // loop_pre_header
      _
    $region3: #{tpu_custom_call.1} parent=1 // loop_header
      %s16 = sphi 0, %s20
      %p17 = scmp.ge.s32.totalorder %s16, 4
      %s26 = sphi 0, %s28
      %s29 = sphi 0, %s26
      %s30 = sphi 0, %s29
      %s46 = sphi 0, %s30
      %s50 = sphi 0, %s50
      %s52 = sphi 0, %s50
      %s53 = sphi 0, %s52
      %s67 = sphi 0, %s53
      %s71 = sphi 0, %s71
      %s73 = sphi 0, %s71
      %s74 = sphi 0, %s73
      %s88 = sphi 0, %s74
      %s94 = sphi 0, %s96
      %s97 = sphi 0, %s94
      %s98 = sphi 0, %s97
      %s114 = sphi 0, %s98
    $region4: #{tpu_custom_call.1} parent=1 // loop_header_branch
      %19 = sbr.rel (%p17) target = $region8
    $region5: #{tpu_custom_call.1} parent=1 // loop_body
      %s21 = ssub.s32 %s16, 1
      %s22 = ssub.s32 %s16, 2
      %s23 = sadd.s32 %s16, 1
      %s24 = ssub.s32 %s16, %s23
      %p25 = scmp.eq.s32.totalorder %s24, 0
      %s27 = sadd.s32 %s26, 1
      %s28 = scalar_select %p25, %s26, %s27
      %p31 = pneg %p25
      %p32 = scmp.eq.s32.totalorder %s16, 1
      %p33 = por %p31, %p32
      %p34 = scmp.ne.s32.totalorder %s26, %s29
      %p35 = scmp.eq.s32.totalorder %s16, 0
      %p36 = por %p34, %p35
      %p37 = scmp.ne.s32.totalorder %s26, %s29
      %p38 = scmp.eq.s32.totalorder %s21, 1
      %p39 = por %p37, %p38
      %p40 = scmp.ne.s32.totalorder %s29, %s30
      %p41 = scmp.eq.s32.totalorder %s21, 0
      %p42 = por %p40, %p41
      %p43 = scmp.ne.s32.totalorder %s29, %s30
      %p44 = scmp.eq.s32.totalorder %s22, 1
      %p45 = por %p43, %p44
      %p47 = scmp.ne.s32.totalorder %s30, %s46
      %p48 = scmp.eq.s32.totalorder %s22, 0
      %p49 = por %p47, %p48
      %s51 = sadd.s32 %s50, 1
      %p54 = scmp.eq.s32.totalorder %s16, 1
      %p55 = scmp.ne.s32.totalorder %s50, %s52
      %p56 = scmp.eq.s32.totalorder %s16, 0
      %p57 = por %p55, %p56
      %p58 = scmp.ne.s32.totalorder %s50, %s52
      %p59 = scmp.eq.s32.totalorder %s21, 1
      %p60 = por %p58, %p59
      %p61 = scmp.ne.s32.totalorder %s52, %s53
      %p62 = scmp.eq.s32.totalorder %s21, 0
      %p63 = por %p61, %p62
      %p64 = scmp.ne.s32.totalorder %s52, %s53
      %p65 = scmp.eq.s32.totalorder %s22, 1
      %p66 = por %p64, %p65
      %p68 = scmp.ne.s32.totalorder %s53, %s67
      %p69 = scmp.eq.s32.totalorder %s22, 0
      %p70 = por %p68, %p69
      %s72 = sadd.s32 %s71, 1
      %p75 = scmp.eq.s32.totalorder %s16, 1
      %p76 = scmp.ne.s32.totalorder %s71, %s73
      %p77 = scmp.eq.s32.totalorder %s16, 0
      %p78 = por %p76, %p77
      %p79 = scmp.ne.s32.totalorder %s71, %s73
      %p80 = scmp.eq.s32.totalorder %s21, 1
      %p81 = por %p79, %p80
      %p82 = scmp.ne.s32.totalorder %s73, %s74
      %p83 = scmp.eq.s32.totalorder %s21, 0
      %p84 = por %p82, %p83
      %p85 = scmp.ne.s32.totalorder %s73, %s74
      %p86 = scmp.eq.s32.totalorder %s22, 1
      %p87 = por %p85, %p86
      %p89 = scmp.ne.s32.totalorder %s74, %s88
      %p90 = scmp.eq.s32.totalorder %s22, 0
      %p91 = por %p89, %p90
      %s92 = ssub.s32 %s16, %s23
      %p93 = scmp.eq.s32.totalorder %s92, 0
      %s95 = sadd.s32 %s94, 1
      %s96 = scalar_select %p93, %s94, %s95
      %p99 = pneg %p93
      %p100 = scmp.eq.s32.totalorder %s16, 1
      %p101 = por %p99, %p100
      %p102 = scmp.ne.s32.totalorder %s94, %s97
      %p103 = scmp.eq.s32.totalorder %s16, 0
      %p104 = por %p102, %p103
      %p105 = scmp.ne.s32.totalorder %s94, %s97
      %p106 = scmp.eq.s32.totalorder %s21, 1
      %p107 = por %p105, %p106
      %p108 = scmp.ne.s32.totalorder %s97, %s98
      %p109 = scmp.eq.s32.totalorder %s21, 0
      %p110 = por %p108, %p109
      %p111 = scmp.ne.s32.totalorder %s97, %s98
      %p112 = scmp.eq.s32.totalorder %s22, 1
      %p113 = por %p111, %p112
      %p115 = scmp.ne.s32.totalorder %s98, %s114
      %p116 = scmp.eq.s32.totalorder %s22, 0
      %p117 = por %p115, %p116
      %p118 = scmp.le.s32.totalorder 1, %s16
      %p119 = scmp.lt.s32.totalorder %s16, 3
      %p120 = pnand %p118, %p119
      %p121 = pneg %p120
      // Predicated region
      $region9: #{tpu_custom_call.1} parent=5 // pred_check
        _
      $region10: #{tpu_custom_call.1} parent=5 // pred_check_branch
        %123 = sbr.rel (%p120) target = $region12
      $region11: #{tpu_custom_call.1} parent=5 // pred_region
        %s124 = ssub.s32 %s16, 1
        // Predicated region
        $region13: #{tpu_custom_call.1} parent=11 // pred_check
          %p125 = pneg %p63
        $region14: #{tpu_custom_call.1} parent=11 // pred_check_branch
          %127 = sbr.rel (%p125) target = $region16
        $region15: #{tpu_custom_call.1} parent=11 // pred_region
          %129 = vsyncadd [#allocation6], 0
          %s131 = sshll.u32 %s1, 4
          %s132 = int_to_ptr.hbm [resolvable:$true] %s131
          %s133 = sshll.u32 [#allocation5], 4
          %s134 = int_to_ptr.vmem [resolvable:$true] %s133
          %136 = dma.hbm_to_vmem [thread:$0]  %s132, 32, %s134, [#allocation6]
        $region16: #{tpu_custom_call.1} parent=11 // pred_fallthru
          _
        // Predicated region
        $region17: #{tpu_custom_call.1} parent=11 // pred_check
          %p137 = pneg %p84
        $region18: #{tpu_custom_call.1} parent=11 // pred_check_branch
          %139 = sbr.rel (%p137) target = $region20
        $region19: #{tpu_custom_call.1} parent=11 // pred_region
          %141 = vsyncadd [#allocation6], 0
          %s143 = sshll.u32 %s2, 4
          %s144 = int_to_ptr.hbm [resolvable:$true] %s143
          %s145 = sshll.u32 [#allocation7], 4
          %s146 = int_to_ptr.vmem [resolvable:$true] %s145
          %148 = dma.hbm_to_vmem [thread:$0]  %s144, 32, %s146, [#allocation6]
        $region20: #{tpu_custom_call.1} parent=11 // pred_fallthru
          _
      $region12: #{tpu_custom_call.1} parent=5 // pred_fallthru
        _
      %p149 = scmp.lt.s32.totalorder %s16, 2
      // Predicated region
      $region21: #{tpu_custom_call.1} parent=5 // pred_check
        %p150 = pneg %p149
      $region22: #{tpu_custom_call.1} parent=5 // pred_check_branch
        %152 = sbr.rel (%p150) target = $region24
      $region23: #{tpu_custom_call.1} parent=5 // pred_region
        // Predicated region
        $region25: #{tpu_custom_call.1} parent=23 // pred_check
          %p153 = pneg %p36
        $region26: #{tpu_custom_call.1} parent=23 // pred_check_branch
          %155 = sbr.rel (%p153) target = $region28
        $region27: #{tpu_custom_call.1} parent=23 // pred_region
          %s156 = sand.u32 %s26, 1
          %s157 = scalar_lea.sflag [#allocation3], %s156
          %s158 = sand.u32 %s26, 1
          %s159 = smul.addr %s158, 256
          %s160 = scalar_lea.vmem [#allocation2], %s159
          %s161 = smul.u32 16, %s16
          %163 = vsyncadd %s157, 0
          %s164 = smul.addr %s161, 2
          %s165 = smul.addr %s164, 8
          %s166 = scalar_lea.hbm %s0, %s165
          %s167 = sshll.u32 %s166, 4
          %s168 = int_to_ptr.hbm [resolvable:$true] %s167
          %s169 = sshll.u32 %s160, 4
          %s170 = int_to_ptr.vmem [resolvable:$true] %s169
          %175 = dma.hbm_to_vmem [thread:$0]  %s168, 4096, %s170, %s157, 256, 256, 16
        $region28: #{tpu_custom_call.1} parent=23 // pred_fallthru
          _
      $region24: #{tpu_custom_call.1} parent=5 // pred_fallthru
        _
      %p176 = scmp.le.s32.totalorder 1, %s16
      %p177 = scmp.lt.s32.totalorder %s16, 3
      %p178 = pnand %p176, %p177
      %p179 = pneg %p178
      // Predicated region
      $region29: #{tpu_custom_call.1} parent=5 // pred_check
        _
      $region30: #{tpu_custom_call.1} parent=5 // pred_check_branch
        %181 = sbr.rel (%p178) target = $region32
      $region31: #{tpu_custom_call.1} parent=5 // pred_region
        %s182 = ssub.s32 %s16, 1
        %s183 = sand.u32 %s29, 1
        %s184 = scalar_lea.sflag [#allocation3], %s183
        %s185 = sand.u32 %s29, 1
        %s186 = smul.addr %s185, 256
        %s187 = scalar_lea.vmem [#allocation2], %s186
        // Predicated region
        $region33: #{tpu_custom_call.1} parent=31 // pred_check
          %p188 = pneg %p42
        $region34: #{tpu_custom_call.1} parent=31 // pred_check_branch
          %190 = sbr.rel (%p188) target = $region36
        $region35: #{tpu_custom_call.1} parent=31 // pred_region
          %192 = dma.done %s184, 4096
        $region36: #{tpu_custom_call.1} parent=31 // pred_fallthru
          _
        // Predicated region
        $region37: #{tpu_custom_call.1} parent=31 // pred_check
          %p193 = pneg %p63
        $region38: #{tpu_custom_call.1} parent=31 // pred_check_branch
          %195 = sbr.rel (%p193) target = $region40
        $region39: #{tpu_custom_call.1} parent=31 // pred_region
          %197 = dma.done [#allocation6], 32
        $region40: #{tpu_custom_call.1} parent=31 // pred_fallthru
          _
        // Predicated region
        $region41: #{tpu_custom_call.1} parent=31 // pred_check
          %p198 = pneg %p84
        $region42: #{tpu_custom_call.1} parent=31 // pred_check_branch
          %200 = sbr.rel (%p198) target = $region44
        $region43: #{tpu_custom_call.1} parent=31 // pred_region
          %202 = dma.done [#allocation6], 32
        $region44: #{tpu_custom_call.1} parent=31 // pred_fallthru
          _
        %s203 = sand.u32 %s29, 1
        %s204 = scalar_lea.sflag [#allocation3], %s203
        %s205 = sand.u32 %s29, 1
        %s206 = smul.addr %s205, 256
        %s207 = scalar_lea.vmem [#allocation2], %s206
        %p208 = pneg %p42
        %p209 = pneg %p39
        %p210 = pneg %p63
        %p211 = pneg %p60
        %p212 = pneg %p84
        %p213 = pneg %p81
        %p214 = pneg %p110
        %p215 = pneg %p107
        %s216 = sand.u32 %s97, 1
        %s217 = scalar_lea.sflag [#allocation4], %s216
        %s218 = sand.u32 %s97, 1
        %s219 = smul.addr %s218, 256
        %s220 = scalar_lea.vmem [#allocation8], %s219
        %s221 = smul.u32 16, %s21
        %s222 = smul.u32 16, %s21
        %v223 = vld [vmem:[%s187] sm:$0xff]
        %v224 = vld [vmem:[%s187 + $0x8] sm:$0xff]
        %v225 = vld [vmem:[%s187 + $0x10] sm:$0xff]
        %v226 = vld [vmem:[%s187 + $0x18] sm:$0xff]
        %v227 = vld [vmem:[%s187 + $0x20] sm:$0xff]
        %v228 = vld [vmem:[%s187 + $0x28] sm:$0xff]
        %v229 = vld [vmem:[%s187 + $0x30] sm:$0xff]
        %v230 = vld [vmem:[%s187 + $0x38] sm:$0xff]
        %v231 = vld [vmem:[%s187 + $0x40] sm:$0xff]
        %v232 = vld [vmem:[%s187 + $0x48] sm:$0xff]
        %v233 = vld [vmem:[%s187 + $0x50] sm:$0xff]
        %v234 = vld [vmem:[%s187 + $0x58] sm:$0xff]
        %v235 = vld [vmem:[%s187 + $0x60] sm:$0xff]
        %v236 = vld [vmem:[%s187 + $0x68] sm:$0xff]
        %v237 = vld [vmem:[%s187 + $0x70] sm:$0xff]
        %v238 = vld [vmem:[%s187 + $0x78] sm:$0xff]
        %v239 = vld [vmem:[%s187 + $0x80] sm:$0xff]
        %v240 = vld [vmem:[%s187 + $0x88] sm:$0xff]
        %v241 = vld [vmem:[%s187 + $0x90] sm:$0xff]
        %v242 = vld [vmem:[%s187 + $0x98] sm:$0xff]
        %v243 = vld [vmem:[%s187 + $0xa0] sm:$0xff]
        %v244 = vld [vmem:[%s187 + $0xa8] sm:$0xff]
        %v245 = vld [vmem:[%s187 + $0xb0] sm:$0xff]
        %v246 = vld [vmem:[%s187 + $0xb8] sm:$0xff]
        %v247 = vld [vmem:[%s187 + $0xc0] sm:$0xff]
        %v248 = vld [vmem:[%s187 + $0xc8] sm:$0xff]
        %v249 = vld [vmem:[%s187 + $0xd0] sm:$0xff]
        %v250 = vld [vmem:[%s187 + $0xd8] sm:$0xff]
        %v251 = vld [vmem:[%s187 + $0xe0] sm:$0xff]
        %v252 = vld [vmem:[%s187 + $0xe8] sm:$0xff]
        %v253 = vld [vmem:[%s187 + $0xf0] sm:$0xff]
        %v254 = vld [vmem:[%s187 + $0xf8] sm:$0xff]
        %v255 = vmul.f32 %v223, %v223
        %v256 = vmul.f32 %v224, %v224
        %v257 = vmul.f32 %v225, %v225
        %v258 = vmul.f32 %v226, %v226
        %v259 = vmul.f32 %v227, %v227
        %v260 = vmul.f32 %v228, %v228
        %v261 = vmul.f32 %v229, %v229
        %v262 = vmul.f32 %v230, %v230
        %v263 = vmul.f32 %v231, %v231
        %v264 = vmul.f32 %v232, %v232
        %v265 = vmul.f32 %v233, %v233
        %v266 = vmul.f32 %v234, %v234
        %v267 = vmul.f32 %v235, %v235
        %v268 = vmul.f32 %v236, %v236
        %v269 = vmul.f32 %v237, %v237
        %v270 = vmul.f32 %v238, %v238
        %v271 = vmul.f32 %v239, %v239
        %v272 = vmul.f32 %v240, %v240
        %v273 = vmul.f32 %v241, %v241
        %v274 = vmul.f32 %v242, %v242
        %v275 = vmul.f32 %v243, %v243
        %v276 = vmul.f32 %v244, %v244
        %v277 = vmul.f32 %v245, %v245
        %v278 = vmul.f32 %v246, %v246
        %v279 = vmul.f32 %v247, %v247
        %v280 = vmul.f32 %v248, %v248
        %v281 = vmul.f32 %v249, %v249
        %v282 = vmul.f32 %v250, %v250
        %v283 = vmul.f32 %v251, %v251
        %v284 = vmul.f32 %v252, %v252
        %v285 = vmul.f32 %v253, %v253
        %v286 = vmul.f32 %v254, %v254
        %v287 = vadd.f32 %v255, %v256
        %288 = vadd.xlane.f32.xlu0 %v287
        %v289 = vpop.xlane.xlu0 %288
        %v290 = vadd.f32 %v257, %v258
        %291 = vadd.xlane.f32.xlu0 %v290
        %v292 = vpop.xlane.xlu0 %291
        %v293 = vadd.f32 %v259, %v260
        %294 = vadd.xlane.f32.xlu0 %v293
        %v295 = vpop.xlane.xlu0 %294
        %v296 = vadd.f32 %v261, %v262
        %297 = vadd.xlane.f32.xlu0 %v296
        %v298 = vpop.xlane.xlu0 %297
        %v299 = vadd.f32 %v263, %v264
        %300 = vadd.xlane.f32.xlu0 %v299
        %v301 = vpop.xlane.xlu0 %300
        %v302 = vadd.f32 %v265, %v266
        %303 = vadd.xlane.f32.xlu0 %v302
        %v304 = vpop.xlane.xlu0 %303
        %v305 = vadd.f32 %v267, %v268
        %306 = vadd.xlane.f32.xlu0 %v305
        %v307 = vpop.xlane.xlu0 %306
        %v308 = vadd.f32 %v269, %v270
        %309 = vadd.xlane.f32.xlu0 %v308
        %v310 = vpop.xlane.xlu0 %309
        %v311 = vadd.f32 %v271, %v272
        %312 = vadd.xlane.f32.xlu0 %v311
        %v313 = vpop.xlane.xlu0 %312
        %v314 = vadd.f32 %v273, %v274
        %315 = vadd.xlane.f32.xlu0 %v314
        %v316 = vpop.xlane.xlu0 %315
        %v317 = vadd.f32 %v275, %v276
        %318 = vadd.xlane.f32.xlu0 %v317
        %v319 = vpop.xlane.xlu0 %318
        %v320 = vadd.f32 %v277, %v278
        %321 = vadd.xlane.f32.xlu0 %v320
        %v322 = vpop.xlane.xlu0 %321
        %v323 = vadd.f32 %v279, %v280
        %324 = vadd.xlane.f32.xlu0 %v323
        %v325 = vpop.xlane.xlu0 %324
        %v326 = vadd.f32 %v281, %v282
        %327 = vadd.xlane.f32.xlu0 %v326
        %v328 = vpop.xlane.xlu0 %327
        %v329 = vadd.f32 %v283, %v284
        %330 = vadd.xlane.f32.xlu0 %v329
        %v331 = vpop.xlane.xlu0 %330
        %v332 = vadd.f32 %v285, %v286
        %333 = vadd.xlane.f32.xlu0 %v332
        %v334 = vpop.xlane.xlu0 %333
        %v335 = vrcp.pop 256.0
        %v336 = vmul.f32 256.0, %v335
        %v337 = vsub.f32 1.0, %v336
        %v338 = vmul.f32 %v335, %v337
        %v339 = vadd.f32 %v335, %v338
        %vm340 = vweird.f32 %v335
        %v341 = vsel %vm340, %v335, %v339
        %v342 = vmul.f32 %v289, %v341
        %v343 = vmul.f32 %v292, %v341
        %v344 = vmul.f32 %v295, %v341
        %v345 = vmul.f32 %v298, %v341
        %v346 = vmul.f32 %v301, %v341
        %v347 = vmul.f32 %v304, %v341
        %v348 = vmul.f32 %v307, %v341
        %v349 = vmul.f32 %v310, %v341
        %v350 = vmul.f32 %v313, %v341
        %v351 = vmul.f32 %v316, %v341
        %v352 = vmul.f32 %v319, %v341
        %v353 = vmul.f32 %v322, %v341
        %v354 = vmul.f32 %v325, %v341
        %v355 = vmul.f32 %v328, %v341
        %v356 = vmul.f32 %v331, %v341
        %v357 = vmul.f32 %v334, %v341
        %v358 = vadd.f32 %v342, 1e-06
        %v359 = vadd.f32 %v343, 1e-06
        %v360 = vadd.f32 %v344, 1e-06
        %v361 = vadd.f32 %v345, 1e-06
        %v362 = vadd.f32 %v346, 1e-06
        %v363 = vadd.f32 %v347, 1e-06
        %v364 = vadd.f32 %v348, 1e-06
        %v365 = vadd.f32 %v349, 1e-06
        %v366 = vadd.f32 %v350, 1e-06
        %v367 = vadd.f32 %v351, 1e-06
        %v368 = vadd.f32 %v352, 1e-06
        %v369 = vadd.f32 %v353, 1e-06
        %v370 = vadd.f32 %v354, 1e-06
        %v371 = vadd.f32 %v355, 1e-06
        %v372 = vadd.f32 %v356, 1e-06
        %v373 = vadd.f32 %v357, 1e-06
        %v374 = vrsqrt.pop %v358
        %v375 = vmul.f32 %v374, %v358
        %v376 = vmul.f32 %v375, %v374
        %v377 = vmul.f32 0.5, %v376
        %v378 = vsub.f32 1.5, %v377
        %v379 = vmul.f32 %v374, %v378
        %vm380 = vweird.f32 %v358
        %vm381 = vweird.f32 %v374
        %vm382 = vmor %vm380, %vm381
        %v383 = vsel %vm382, %v374, %v379
        %v384 = vrsqrt.pop %v359
        %v385 = vmul.f32 %v384, %v359
        %v386 = vmul.f32 %v385, %v384
        %v387 = vmul.f32 0.5, %v386
        %v388 = vsub.f32 1.5, %v387
        %v389 = vmul.f32 %v384, %v388
        %vm390 = vweird.f32 %v359
        %vm391 = vweird.f32 %v384
        %vm392 = vmor %vm390, %vm391
        %v393 = vsel %vm392, %v384, %v389
        %v394 = vrsqrt.pop %v360
        %v395 = vmul.f32 %v394, %v360
        %v396 = vmul.f32 %v395, %v394
        %v397 = vmul.f32 0.5, %v396
        %v398 = vsub.f32 1.5, %v397
        %v399 = vmul.f32 %v394, %v398
        %vm400 = vweird.f32 %v360
        %vm401 = vweird.f32 %v394
        %vm402 = vmor %vm400, %vm401
        %v403 = vsel %vm402, %v394, %v399
        %v404 = vrsqrt.pop %v361
        %v405 = vmul.f32 %v404, %v361
        %v406 = vmul.f32 %v405, %v404
        %v407 = vmul.f32 0.5, %v406
        %v408 = vsub.f32 1.5, %v407
        %v409 = vmul.f32 %v404, %v408
        %vm410 = vweird.f32 %v361
        %vm411 = vweird.f32 %v404
        %vm412 = vmor %vm410, %vm411
        %v413 = vsel %vm412, %v404, %v409
        %v414 = vrsqrt.pop %v362
        %v415 = vmul.f32 %v414, %v362
        %v416 = vmul.f32 %v415, %v414
        %v417 = vmul.f32 0.5, %v416
        %v418 = vsub.f32 1.5, %v417
        %v419 = vmul.f32 %v414, %v418
        %vm420 = vweird.f32 %v362
        %vm421 = vweird.f32 %v414
        %vm422 = vmor %vm420, %vm421
        %v423 = vsel %vm422, %v414, %v419
        %v424 = vrsqrt.pop %v363
        %v425 = vmul.f32 %v424, %v363
        %v426 = vmul.f32 %v425, %v424
        %v427 = vmul.f32 0.5, %v426
        %v428 = vsub.f32 1.5, %v427
        %v429 = vmul.f32 %v424, %v428
        %vm430 = vweird.f32 %v363
        %vm431 = vweird.f32 %v424
        %vm432 = vmor %vm430, %vm431
        %v433 = vsel %vm432, %v424, %v429
        %v434 = vrsqrt.pop %v364
        %v435 = vmul.f32 %v434, %v364
        %v436 = vmul.f32 %v435, %v434
        %v437 = vmul.f32 0.5, %v436
        %v438 = vsub.f32 1.5, %v437
        %v439 = vmul.f32 %v434, %v438
        %vm440 = vweird.f32 %v364
        %vm441 = vweird.f32 %v434
        %vm442 = vmor %vm440, %vm441
        %v443 = vsel %vm442, %v434, %v439
        %v444 = vrsqrt.pop %v365
        %v445 = vmul.f32 %v444, %v365
        %v446 = vmul.f32 %v445, %v444
        %v447 = vmul.f32 0.5, %v446
        %v448 = vsub.f32 1.5, %v447
        %v449 = vmul.f32 %v444, %v448
        %vm450 = vweird.f32 %v365
        %vm451 = vweird.f32 %v444
        %vm452 = vmor %vm450, %vm451
        %v453 = vsel %vm452, %v444, %v449
        %v454 = vrsqrt.pop %v366
        %v455 = vmul.f32 %v454, %v366
        %v456 = vmul.f32 %v455, %v454
        %v457 = vmul.f32 0.5, %v456
        %v458 = vsub.f32 1.5, %v457
        %v459 = vmul.f32 %v454, %v458
        %vm460 = vweird.f32 %v366
        %vm461 = vweird.f32 %v454
        %vm462 = vmor %vm460, %vm461
        %v463 = vsel %vm462, %v454, %v459
        %v464 = vrsqrt.pop %v367
        %v465 = vmul.f32 %v464, %v367
        %v466 = vmul.f32 %v465, %v464
        %v467 = vmul.f32 0.5, %v466
        %v468 = vsub.f32 1.5, %v467
        %v469 = vmul.f32 %v464, %v468
        %vm470 = vweird.f32 %v367
        %vm471 = vweird.f32 %v464
        %vm472 = vmor %vm470, %vm471
        %v473 = vsel %vm472, %v464, %v469
        %v474 = vrsqrt.pop %v368
        %v475 = vmul.f32 %v474, %v368
        %v476 = vmul.f32 %v475, %v474
        %v477 = vmul.f32 0.5, %v476
        %v478 = vsub.f32 1.5, %v477
        %v479 = vmul.f32 %v474, %v478
        %vm480 = vweird.f32 %v368
        %vm481 = vweird.f32 %v474
        %vm482 = vmor %vm480, %vm481
        %v483 = vsel %vm482, %v474, %v479
        %v484 = vrsqrt.pop %v369
        %v485 = vmul.f32 %v484, %v369
        %v486 = vmul.f32 %v485, %v484
        %v487 = vmul.f32 0.5, %v486
        %v488 = vsub.f32 1.5, %v487
        %v489 = vmul.f32 %v484, %v488
        %vm490 = vweird.f32 %v369
        %vm491 = vweird.f32 %v484
        %vm492 = vmor %vm490, %vm491
        %v493 = vsel %vm492, %v484, %v489
        %v494 = vrsqrt.pop %v370
        %v495 = vmul.f32 %v494, %v370
        %v496 = vmul.f32 %v495, %v494
        %v497 = vmul.f32 0.5, %v496
        %v498 = vsub.f32 1.5, %v497
        %v499 = vmul.f32 %v494, %v498
        %vm500 = vweird.f32 %v370
        %vm501 = vweird.f32 %v494
        %vm502 = vmor %vm500, %vm501
        %v503 = vsel %vm502, %v494, %v499
        %v504 = vrsqrt.pop %v371
        %v505 = vmul.f32 %v504, %v371
        %v506 = vmul.f32 %v505, %v504
        %v507 = vmul.f32 0.5, %v506
        %v508 = vsub.f32 1.5, %v507
        %v509 = vmul.f32 %v504, %v508
        %vm510 = vweird.f32 %v371
        %vm511 = vweird.f32 %v504
        %vm512 = vmor %vm510, %vm511
        %v513 = vsel %vm512, %v504, %v509
        %v514 = vrsqrt.pop %v372
        %v515 = vmul.f32 %v514, %v372
        %v516 = vmul.f32 %v515, %v514
        %v517 = vmul.f32 0.5, %v516
        %v518 = vsub.f32 1.5, %v517
        %v519 = vmul.f32 %v514, %v518
        %vm520 = vweird.f32 %v372
        %vm521 = vweird.f32 %v514
        %vm522 = vmor %vm520, %vm521
        %v523 = vsel %vm522, %v514, %v519
        %v524 = vrsqrt.pop %v373
        %v525 = vmul.f32 %v524, %v373
        %v526 = vmul.f32 %v525, %v524
        %v527 = vmul.f32 0.5, %v526
        %v528 = vsub.f32 1.5, %v527
        %v529 = vmul.f32 %v524, %v528
        %vm530 = vweird.f32 %v373
        %vm531 = vweird.f32 %v524
        %vm532 = vmor %vm530, %vm531
        %v533 = vsel %vm532, %v524, %v529
        %v534 = vmul.f32 %v223, %v383
        %v535 = vmul.f32 %v224, %v383
        %v536 = vmul.f32 %v225, %v393
        %v537 = vmul.f32 %v226, %v393
        %v538 = vmul.f32 %v227, %v403
        %v539 = vmul.f32 %v228, %v403
        %v540 = vmul.f32 %v229, %v413
        %v541 = vmul.f32 %v230, %v413
        %v542 = vmul.f32 %v231, %v423
        %v543 = vmul.f32 %v232, %v423
        %v544 = vmul.f32 %v233, %v433
        %v545 = vmul.f32 %v234, %v433
        %v546 = vmul.f32 %v235, %v443
        %v547 = vmul.f32 %v236, %v443
        %v548 = vmul.f32 %v237, %v453
        %v549 = vmul.f32 %v238, %v453
        %v550 = vmul.f32 %v239, %v463
        %v551 = vmul.f32 %v240, %v463
        %v552 = vmul.f32 %v241, %v473
        %v553 = vmul.f32 %v242, %v473
        %v554 = vmul.f32 %v243, %v483
        %v555 = vmul.f32 %v244, %v483
        %v556 = vmul.f32 %v245, %v493
        %v557 = vmul.f32 %v246, %v493
        %v558 = vmul.f32 %v247, %v503
        %v559 = vmul.f32 %v248, %v503
        %v560 = vmul.f32 %v249, %v513
        %v561 = vmul.f32 %v250, %v513
        %v562 = vmul.f32 %v251, %v523
        %v563 = vmul.f32 %v252, %v523
        %v564 = vmul.f32 %v253, %v533
        %v565 = vmul.f32 %v254, %v533
        %v566 = vld [vmem:[#allocation5] sm:$0x3]
        %v568 = vperm.slane %v566, 0
        %v569 = vperm.slane %v566, 1
        %v572 = vmul.f32 %v534, %v568
        %v573 = vmul.f32 %v535, %v569
        %v574 = vmul.f32 %v536, %v568
        %v575 = vmul.f32 %v537, %v569
        %v576 = vmul.f32 %v538, %v568
        %v577 = vmul.f32 %v539, %v569
        %v578 = vmul.f32 %v540, %v568
        %v579 = vmul.f32 %v541, %v569
        %v580 = vmul.f32 %v542, %v568
        %v581 = vmul.f32 %v543, %v569
        %v582 = vmul.f32 %v544, %v568
        %v583 = vmul.f32 %v545, %v569
        %v584 = vmul.f32 %v546, %v568
        %v585 = vmul.f32 %v547, %v569
        %v586 = vmul.f32 %v548, %v568
        %v587 = vmul.f32 %v549, %v569
        %v588 = vmul.f32 %v550, %v568
        %v589 = vmul.f32 %v551, %v569
        %v590 = vmul.f32 %v552, %v568
        %v591 = vmul.f32 %v553, %v569
        %v592 = vmul.f32 %v554, %v568
        %v593 = vmul.f32 %v555, %v569
        %v594 = vmul.f32 %v556, %v568
        %v595 = vmul.f32 %v557, %v569
        %v596 = vmul.f32 %v558, %v568
        %v597 = vmul.f32 %v559, %v569
        %v598 = vmul.f32 %v560, %v568
        %v599 = vmul.f32 %v561, %v569
        %v600 = vmul.f32 %v562, %v568
        %v601 = vmul.f32 %v563, %v569
        %v602 = vmul.f32 %v564, %v568
        %v603 = vmul.f32 %v565, %v569
        %v604 = vld [vmem:[#allocation7] sm:$0x3]
        %v606 = vperm.slane %v604, 0
        %v607 = vperm.slane %v604, 1
        %v610 = vadd.f32 %v572, %v606
        %v611 = vadd.f32 %v573, %v607
        %v612 = vadd.f32 %v574, %v606
        %v613 = vadd.f32 %v575, %v607
        %v614 = vadd.f32 %v576, %v606
        %v615 = vadd.f32 %v577, %v607
        %v616 = vadd.f32 %v578, %v606
        %v617 = vadd.f32 %v579, %v607
        %v618 = vadd.f32 %v580, %v606
        %v619 = vadd.f32 %v581, %v607
        %v620 = vadd.f32 %v582, %v606
        %v621 = vadd.f32 %v583, %v607
        %v622 = vadd.f32 %v584, %v606
        %v623 = vadd.f32 %v585, %v607
        %v624 = vadd.f32 %v586, %v606
        %v625 = vadd.f32 %v587, %v607
        %v626 = vadd.f32 %v588, %v606
        %v627 = vadd.f32 %v589, %v607
        %v628 = vadd.f32 %v590, %v606
        %v629 = vadd.f32 %v591, %v607
        %v630 = vadd.f32 %v592, %v606
        %v631 = vadd.f32 %v593, %v607
        %v632 = vadd.f32 %v594, %v606
        %v633 = vadd.f32 %v595, %v607
        %v634 = vadd.f32 %v596, %v606
        %v635 = vadd.f32 %v597, %v607
        %v636 = vadd.f32 %v598, %v606
        %v637 = vadd.f32 %v599, %v607
        %v638 = vadd.f32 %v600, %v606
        %v639 = vadd.f32 %v601, %v607
        %v640 = vadd.f32 %v602, %v606
        %v641 = vadd.f32 %v603, %v607
        %642 = vst [vmem:[%s220] sm:$0xff] %v610
        %643 = vst [vmem:[%s220 + $0x8] sm:$0xff] %v611
        %644 = vst [vmem:[%s220 + $0x10] sm:$0xff] %v612
        %645 = vst [vmem:[%s220 + $0x18] sm:$0xff] %v613
        %646 = vst [vmem:[%s220 + $0x20] sm:$0xff] %v614
        %647 = vst [vmem:[%s220 + $0x28] sm:$0xff] %v615
        %648 = vst [vmem:[%s220 + $0x30] sm:$0xff] %v616
        %649 = vst [vmem:[%s220 + $0x38] sm:$0xff] %v617
        %650 = vst [vmem:[%s220 + $0x40] sm:$0xff] %v618
        %651 = vst [vmem:[%s220 + $0x48] sm:$0xff] %v619
        %652 = vst [vmem:[%s220 + $0x50] sm:$0xff] %v620
        %653 = vst [vmem:[%s220 + $0x58] sm:$0xff] %v621
        %654 = vst [vmem:[%s220 + $0x60] sm:$0xff] %v622
        %655 = vst [vmem:[%s220 + $0x68] sm:$0xff] %v623
        %656 = vst [vmem:[%s220 + $0x70] sm:$0xff] %v624
        %657 = vst [vmem:[%s220 + $0x78] sm:$0xff] %v625
        %658 = vst [vmem:[%s220 + $0x80] sm:$0xff] %v626
        %659 = vst [vmem:[%s220 + $0x88] sm:$0xff] %v627
        %660 = vst [vmem:[%s220 + $0x90] sm:$0xff] %v628
        %661 = vst [vmem:[%s220 + $0x98] sm:$0xff] %v629
        %662 = vst [vmem:[%s220 + $0xa0] sm:$0xff] %v630
        %663 = vst [vmem:[%s220 + $0xa8] sm:$0xff] %v631
        %664 = vst [vmem:[%s220 + $0xb0] sm:$0xff] %v632
        %665 = vst [vmem:[%s220 + $0xb8] sm:$0xff] %v633
        %666 = vst [vmem:[%s220 + $0xc0] sm:$0xff] %v634
        %667 = vst [vmem:[%s220 + $0xc8] sm:$0xff] %v635
        %668 = vst [vmem:[%s220 + $0xd0] sm:$0xff] %v636
        %669 = vst [vmem:[%s220 + $0xd8] sm:$0xff] %v637
        %670 = vst [vmem:[%s220 + $0xe0] sm:$0xff] %v638
        %671 = vst [vmem:[%s220 + $0xe8] sm:$0xff] %v639
        %672 = vst [vmem:[%s220 + $0xf0] sm:$0xff] %v640
        %673 = vst [vmem:[%s220 + $0xf8] sm:$0xff] %v641
        %s674 = sand.u32 %s97, 1
        %s675 = scalar_lea.sflag [#allocation4], %s674
        %s676 = sand.u32 %s97, 1
        %s677 = smul.addr %s676, 256
        %s678 = scalar_lea.vmem [#allocation8], %s677
        // Predicated region
        $region45: #{tpu_custom_call.1} parent=31 // pred_check
          %p679 = pneg %p107
        $region46: #{tpu_custom_call.1} parent=31 // pred_check_branch
          %681 = sbr.rel (%p679) target = $region48
        $region47: #{tpu_custom_call.1} parent=31 // pred_region
          %s682 = smul.u32 16, %s21
          %684 = vsyncadd %s675, 0
          %s685 = smul.addr %s682, 2
          %s686 = smul.addr %s685, 8
          %s687 = scalar_lea.hbm %s3, %s686
          %s688 = sshll.u32 %s678, 4
          %s689 = int_to_ptr.vmem [resolvable:$true] %s688
          %s690 = sshll.u32 %s687, 4
          %s691 = int_to_ptr.hbm [resolvable:$true] %s690
          %696 = dma.vmem_to_hbm [thread:$0]  %s689, 4096, %s691, %s675, 256, 256, 16
        $region48: #{tpu_custom_call.1} parent=31 // pred_fallthru
          _
      $region32: #{tpu_custom_call.1} parent=5 // pred_fallthru
        _
      %p697 = scmp.le.s32.totalorder 2, %s16
      // Predicated region
      $region49: #{tpu_custom_call.1} parent=5 // pred_check
        %p698 = pneg %p697
      $region50: #{tpu_custom_call.1} parent=5 // pred_check_branch
        %700 = sbr.rel (%p698) target = $region52
      $region51: #{tpu_custom_call.1} parent=5 // pred_region
        %s701 = ssub.s32 %s16, 2
        // Predicated region
        $region53: #{tpu_custom_call.1} parent=51 // pred_check
          %p702 = pneg %p113
        $region54: #{tpu_custom_call.1} parent=51 // pred_check_branch
          %704 = sbr.rel (%p702) target = $region56
        $region55: #{tpu_custom_call.1} parent=51 // pred_region
          %s705 = sand.u32 %s98, 1
          %s706 = scalar_lea.sflag [#allocation4], %s705
          %s707 = sand.u32 %s98, 1
          %s708 = smul.addr %s707, 256
          %s709 = scalar_lea.vmem [#allocation8], %s708
          %711 = dma.done %s706, 4096
        $region56: #{tpu_custom_call.1} parent=51 // pred_fallthru
          _
      $region52: #{tpu_custom_call.1} parent=5 // pred_fallthru
        _
    $region6: #{tpu_custom_call.1} parent=1 // loop_footer
      %s20 = sadd.s32 1, %s16
    $region7: #{tpu_custom_call.1} parent=1 // loop_footer_branch
      %15 = sbr.rel target = $region3
    $region8: #{tpu_custom_call.1} parent=1 // loop_exit
      _
    %712 = vsyncpa [#allocation3], 1
    %s713 = scalar_lea.sflag [#allocation3], 1
    %714 = vsyncpa %s713, 1
    %715 = vsyncpa [#allocation6], 1
    %716 = vsyncpa [#allocation4], 1
    %s717 = scalar_lea.sflag [#allocation4], 1
    %718 = vsyncpa %s717, 1

</llo_original>
